<compile_context>
chip_gen: v6e
topology: v6e:2x2x1
jax: 0.10.0
libtpu: 0.0.40
codegen_flags: <defaults>
</compile_context>

<pallas_src>
import functools
import math

import jax
import jax.numpy as jnp
from jax.experimental import pallas as pl
from jax.experimental.pallas import tpu as pltpu


# ---------------------------------------------------------------------------
# Small helpers
# ---------------------------------------------------------------------------

def _cdiv(a, b):
    return -(-a // b)


def _round_up(a, m):
    return _cdiv(a, m) * m


def _vmem_budgets():
    """(tile budget, vmem_limit_bytes), generation-aware."""
    cap = None
    try:
        cap = getattr(pltpu.get_tpu_info(), "vmem_capacity_bytes", None)
    except Exception:  # pragma: no cover - query can fail off-TPU
        cap = None
    if cap is None:
        cap = 64 * 1024 * 1024                 # assume smallest (v7x per-TC)
    if cap >= 100 * 1024 * 1024:               # v5e / v6e: 128 MiB physical
        return 72 * 1024 * 1024, 96 * 1024 * 1024
    return 28 * 1024 * 1024, 48 * 1024 * 1024  # v7x-safe


def _choose_block_rows(R0, Cf, Gf, itemsize, n_streams, sub, budget):
    """Largest row tile that keeps double-buffered row streams + fp32 temps +
    the (loop-invariant, double-buffered) one-hot tables under budget, while
    guaranteeing >= 2 grid steps so v7x's second TensorCore has work."""
    n_temps = 6                                     # x(+r), x*x, scale_c, shift_c, y, ro
    per_row = 2 * n_streams * itemsize * Cf + n_temps * 4 * Cf
    fixed = 2 * 4 * (Cf * Gf + (Gf + 1) * Cf)       # oh + ohwb, double buffered
    avail = max(budget - fixed, per_row * sub)
    br = max(sub, (int(avail // per_row) // sub) * sub)
    br = min(br, 4096)
    if R0 > sub:
        # never let the grid collapse to a single step (megacore sharding)
        br = min(br, _round_up(_cdiv(R0, 2), sub))
    if br >= R0:
        return R0
    # rebalance: same number of steps, smallest tile (minimizes ragged tail)
    n = _cdiv(R0, br)
    br = min(br, _round_up(_cdiv(R0, n), sub))
    return max(sub, br)


# ---------------------------------------------------------------------------
# Kernels
# ---------------------------------------------------------------------------

def _stats_and_norm(x, oh, ohwb, inv_gs, eps):
    """Group-norm body on an f32 (TR, Cf) tile.

    oh   : (Cf, Gf)    channel->group one-hot (reduce matmuls; f32 or bf16).
    ohwb : (Gf+1, Cf)  one-hot.T with per-channel weight folded in, plus a
                       final bias row, so scale/shift are single MXU matmuls.
    """
    xs = x.astype(oh.dtype)
    # Two independent MXU reductions (pipeline-friendly): sum(x), sum(x^2).
    sums = jnp.dot(xs, oh, preferred_element_type=jnp.float32)       # (TR, Gf)
    sqs = jnp.dot(xs * xs, oh, preferred_element_type=jnp.float32)   # (TR, Gf)
    mean = sums * inv_gs
    var = jnp.maximum(sqs * inv_gs - mean * mean, 0.0)
    rstd = jax.lax.rsqrt(var + eps)
    tr = x.shape[0]
    zero_col = jnp.zeros((tr, 1), jnp.float32)
    one_col = jnp.ones((tr, 1), jnp.float32)
    # Broadcast per-group scale/shift back to channels on the MXU; the extra
    # column selects (zero_col) / adds (one_col) the bias row of ohwb.
    scale_c = jnp.dot(jnp.concatenate([rstd, zero_col], axis=-1), ohwb,
                      preferred_element_type=jnp.float32)            # (TR, Cf)
    shift_c = jnp.dot(jnp.concatenate([-(mean * rstd), one_col], axis=-1), ohwb,
                      preferred_element_type=jnp.float32)            # (TR, Cf)
    return x * scale_c + shift_c


def _gn_kernel(x_ref, oh_ref, ohwb_ref, o_ref, *, inv_gs, eps):
    x = x_ref[...].astype(jnp.float32)
    y = _stats_and_norm(x, oh_ref[...], ohwb_ref[...], inv_gs, eps)
    o_ref[...] = y.astype(o_ref.dtype)


def _gn_res_kernel(x_ref, r_ref, oh_ref, ohwb_ref, o_ref, *, inv_gs, eps):
    # Residual add in-kernel; the sum is NOT written back (return_residual=False).
    # r_ref may be (TR, Cf) or a row-broadcast (1, Cf) block.
    x = x_ref[...].astype(jnp.float32) + r_ref[...].astype(jnp.float32)
    y = _stats_and_norm(x, oh_ref[...], ohwb_ref[...], inv_gs, eps)
    o_ref[...] = y.astype(o_ref.dtype)


def _gn_res_out_kernel(x_ref, r_ref, oh_ref, ohwb_ref, o_ref, ro_ref, *, inv_gs, eps):
    x = x_ref[...].astype(jnp.float32) + r_ref[...].astype(jnp.float32)
    ro_ref[...] = x.astype(ro_ref.dtype)
    y = _stats_and_norm(x, oh_ref[...], ohwb_ref[...], inv_gs, eps)
    o_ref[...] = y.astype(o_ref.dtype)


# ---------------------------------------------------------------------------
# Wrapper
# ---------------------------------------------------------------------------

def group_norm_pallas(x, weight, bias, num_groups, eps=1e-5,
                      residual=None, return_residual=False,
                      block_rows=None, stats_in_bf16=None):
    """GroupNorm over the last dimension of x (channels-last).

    x: (..., C).  weight/bias: (C,) or None.
    residual: optional tensor broadcast-compatible with x; if given, the norm
    is applied to (x + residual); that sum is returned when return_residual.
    """
    orig_shape = x.shape
    orig_dtype = x.dtype
    C = orig_shape[-1]
    if C % num_groups != 0:
        raise ValueError("num_channels must be divisible by num_groups")
    group_size = C // num_groups
    inv_gs = 1.0 / float(group_size)

    rows = 1
    for d in orig_shape[:-1]:
        rows *= int(d)

    has_res = residual is not None
    # Row-broadcast residual ((C,) or leading-1 dims): keep it low-rank.
    res_rowbc = (has_res and residual.ndim >= 1 and residual.shape[-1] == C
                 and all(int(d) == 1 for d in residual.shape[:-1]))

    # --- lane fold: make the channel (lane) dim a multiple of 128 ------------
    fold_min = 128 // math.gcd(C, 128)
    fold = fold_min if (1 < fold_min <= 16 and rows % fold_min == 0) else 1
    Cf = C * fold
    Gf = num_groups * fold
    R0 = rows // fold

    x2 = x.reshape(R0, Cf)                        # contiguous reshape: free
    res2 = res_row = None
    if has_res and res_rowbc:
        res_row = jnp.tile(residual.reshape(1, C), (1, fold))       # (1, Cf)
    elif has_res:
        # TODO(synk): residuals that broadcast over *some* leading dims (e.g.
        # (seq, C) under (batch, seq, C)) are still materialized; a modular
        # index_map could avoid that HBM traffic too.
        res2 = jnp.broadcast_to(residual, orig_shape).reshape(R0, Cf)

    # --- affine / one-hot tables (identity affine if absent) ----------------
    w32 = (jnp.ones((C,), jnp.float32) if weight is None
           else weight.astype(jnp.float32).reshape(C))
    b32 = (jnp.zeros((C,), jnp.float32) if bias is None
           else bias.astype(jnp.float32).reshape(C))

    if stats_in_bf16 is None:
        # v5e: f32 MXU is slow; for many groups the one-hot reductions become
        # the bottleneck -> feed them bf16 operands (f32 accumulation).
        stats_in_bf16 = num_groups >= 64
    stats_dtype = jnp.bfloat16 if stats_in_bf16 else jnp.float32

    # Channel -> group one-hot (Cf, Gf); block-diagonal across folded replicas.
    oh_f32 = (jnp.arange(Cf, dtype=jnp.int32)[:, None] // group_size
              == jnp.arange(Gf, dtype=jnp.int32)[None, :]).astype(jnp.float32)
    oh = oh_f32.astype(stats_dtype)
    # (Gf+1, Cf): rows 0..Gf-1 = one-hot.T * weight, row Gf = bias.
    ohwb = jnp.concatenate(
        [oh_f32.T * jnp.tile(w32, fold)[None, :],
         jnp.tile(b32, fold).reshape(1, Cf)], axis=0)

    # --- row tiling (VMEM- and generation-aware) ------------------------------
    itemsize = jnp.dtype(orig_dtype).itemsize
    sub = max(8, 32 // max(itemsize, 1))          # native sublane: 8 f32 / 16 bf16 / 32 int8
    n_streams = 2                                  # x in, y out (per-row HBM streams)
    if has_res and not res_rowbc:
        n_streams += 1
    if has_res and return_residual:
        n_streams += 1
    tile_budget, vmem_limit = _vmem_budgets()
    if block_rows is None:
        block_rows = _choose_block_rows(R0, Cf, Gf, itemsize, n_streams, sub, tile_budget)
    else:
        block_rows = min(int(block_rows), R0)
        if block_rows < R0:
            block_rows = max(sub, (block_rows // sub) * sub)
    grid = (_cdiv(R0, block_rows),)               # ragged tail -> partial last block

    # --- specs ----------------------------------------------------------------
    x_spec = pl.BlockSpec((block_rows, Cf), lambda i: (i, 0))
    o_spec = pl.BlockSpec((block_rows, Cf), lambda i: (i, 0))
    oh_spec = pl.BlockSpec((Cf, Gf), lambda i: (0, 0))
    ohwb_spec = pl.BlockSpec((Gf + 1, Cf), lambda i: (0, 0))
    # TODO(synk): once pl.Buffered(1) is validated on this JAX version, mark the
    # loop-invariant oh/ohwb specs single-buffered to halve their VMEM footprint.

    cparams = pltpu.CompilerParams(
        dimension_semantics=("parallel",),
        vmem_limit_bytes=vmem_limit)

    if not has_res:
        kern = functools.partial(_gn_kernel, inv_gs=inv_gs, eps=eps)
        y2 = pl.pallas_call(
            kern,
            out_shape=jax.ShapeDtypeStruct((R0, Cf), orig_dtype),
            grid_spec=pltpu.PrefetchScalarGridSpec(
                num_scalar_prefetch=0, grid=grid,
                in_specs=[x_spec, oh_spec, ohwb_spec],
                out_specs=o_spec),
            compiler_params=cparams,
        )(x2, oh, ohwb)
        y = y2.reshape(orig_shape)
        return (y, x) if return_residual else y

    r_spec = pl.BlockSpec((1, Cf), lambda i: (0, 0)) if res_rowbc else x_spec
    r_arg = res_row if res_rowbc else res2

    if not return_residual:
        kern = functools.partial(_gn_res_kernel, inv_gs=inv_gs, eps=eps)
        y2 = pl.pallas_call(
            kern,
            out_shape=jax.ShapeDtypeStruct((R0, Cf), orig_dtype),
            grid_spec=pltpu.PrefetchScalarGridSpec(
                num_scalar_prefetch=0, grid=grid,
                in_specs=[x_spec, r_spec, oh_spec, ohwb_spec],
                out_specs=o_spec),
            compiler_params=cparams,
        )(x2, r_arg, oh, ohwb)
        return y2.reshape(orig_shape)

    kern = functools.partial(_gn_res_out_kernel, inv_gs=inv_gs, eps=eps)
    y2, ro2 = pl.pallas_call(
        kern,
        out_shape=(jax.ShapeDtypeStruct((R0, Cf), orig_dtype),
                   jax.ShapeDtypeStruct((R0, Cf), orig_dtype)),
        grid_spec=pltpu.PrefetchScalarGridSpec(
            num_scalar_prefetch=0, grid=grid,
            in_specs=[x_spec, r_spec, oh_spec, ohwb_spec],
            out_specs=[o_spec, o_spec]),
        compiler_params=cparams,
    )(x2, r_arg, oh, ohwb)
    return y2.reshape(orig_shape), ro2.reshape(orig_shape)


# ---------------------------------------------------------------------------
# Reference + module mirror
# ---------------------------------------------------------------------------

def _group_norm_ref(x, weight, bias, num_groups, eps):
    """Pure-JAX reference (channels-last group norm)."""
    C = x.shape[-1]
    g = num_groups
    xg = x.astype(jnp.float32).reshape(x.shape[:-1] + (g, C // g))
    mean = xg.mean(axis=-1, keepdims=True)
    var = ((xg - mean) ** 2).mean(axis=-1, keepdims=True)
    y = (xg - mean) * jax.lax.rsqrt(var + eps)
    y = y.reshape(x.shape)
    if weight is not None:
        y = y * weight.astype(jnp.float32)
    if bias is not None:
        y = y + bias.astype(jnp.float32)
    return y.astype(x.dtype)


class GroupNorm:
    """Mirror of the PyTorch module (deterministic init: weight=1, bias=0)."""

    def __init__(self, num_channels, num_groups, eps=1e-5, affine=True, bias=True):
        if num_channels % num_groups != 0:
            raise ValueError("num_channels must be divisible by num_groups")
        self.num_groups = num_groups
        self.num_channels = num_channels
        self.eps = eps
        self.affine = affine
        if affine:
            self.weight = jnp.ones((num_channels,), jnp.float32)
            self.bias = jnp.zeros((num_channels,), jnp.float32) if bias else None
        else:
            self.weight = None
            self.bias = None

    def __call__(self, x, residual=None, return_residual=False):
        return group_norm_pallas(x, self.weight, self.bias, self.num_groups,
                                 eps=self.eps, residual=residual,
                                 return_residual=return_residual)


# ---------------------------------------------------------------------------
# Self-test
# ---------------------------------------------------------------------------

if __name__ == "__main__":
    key = jax.random.PRNGKey(0)
    k1, k2, k3, k4 = jax.random.split(key, 4)

    batch, seq, hidden = 2, 8, 32
    num_groups = 4

    x = jax.random.normal(k1, (batch, seq, hidden), dtype=jnp.float32)
    residual = jax.random.normal(k2, (batch, seq, hidden), dtype=jnp.float32)

    gn = GroupNorm(num_channels=hidden, num_groups=num_groups, eps=1e-5)

    # plain forward (exercises the lane-folded small-C path: C=32 -> Cf=128)
    y = jax.block_until_ready(gn(x))
    y_ref = _group_norm_ref(x, gn.weight, gn.bias, num_groups, gn.eps)
    assert jnp.allclose(y, y_ref, atol=1e-4, rtol=1e-4), "mismatch (no residual)"

    # residual path without returning the residual (single-output kernel)
    y1 = jax.block_until_ready(gn(x, residual=residual))
    y1_ref = _group_norm_ref(x + residual, gn.weight, gn.bias, num_groups, gn.eps)
    assert jnp.allclose(y1, y1_ref, atol=1e-4, rtol=1e-4), "mismatch (residual, no resout)"

    # residual + return_residual path
    y2, res_out = gn(x, residual=residual, return_residual=True)
    y2 = jax.block_until_ready(y2)
    assert jnp.allclose(y2, y1_ref, atol=1e-4, rtol=1e-4), "mismatch (residual)"
    assert jnp.allclose(res_out, x + residual, atol=1e-5, rtol=1e-5), "residual out mismatch"

    # row-broadcast residual (shape (C,)) -> low-rank (1, Cf) residual path
    r_row = jax.random.normal(k4, (hidden,), dtype=jnp.float32)
    y4, res_out4 = gn(x, residual=r_row, return_residual=True)
    y4 = jax.block_until_ready(y4)
    y4_ref = _group_norm_ref(x + r_row, gn.weight, gn.bias, num_groups, gn.eps)
    assert jnp.allclose(y4, y4_ref, atol=1e-4, rtol=1e-4), "mismatch (rowbc residual)"
    assert jnp.allclose(res_out4, x + r_row, atol=1e-5, rtol=1e-5), "rowbc residual out mismatch"

    # ragged row count + forced small tile: exercises partial last block + multi-step grid
    x3 = jax.random.normal(k3, (3, 7, 128), dtype=jnp.float32)
    w3 = jnp.ones((128,), jnp.float32)
    b3 = jnp.zeros((128,), jnp.float32)
    y3 = jax.block_until_ready(
        group_norm_pallas(x3, w3, b3, num_groups=8, eps=1e-5, block_rows=8))
    y3_ref = _group_norm_ref(x3, w3, b3, 8, 1e-5)
    assert jnp.allclose(y3, y3_ref, atol=1e-4, rtol=1e-4), "mismatch (ragged/tiled)"

    # bf16 input (sublane multiple 16, f32 compute inside the kernel)
    xb = x.astype(jnp.bfloat16)
    yb = jax.block_until_ready(gn(xb))
    yb_ref = _group_norm_ref(xb, gn.weight, gn.bias, num_groups, gn.eps)
    assert jnp.allclose(yb.astype(jnp.float32), yb_ref.astype(jnp.float32),
                        atol=3e-2, rtol=3e-2), "mismatch (bf16)"

    print("KERNEL_OK")
</pallas_src>

<mosaic_0001>
module attributes {stable_mosaic.version = 11 : i64} {
  func.func @_gn_kernel(%arg0: i32, %arg1: memref<4x128xf32, #tpu.memory_space<vmem>>, %arg2: memref<128x16xf32, #tpu.memory_space<vmem>>, %arg3: memref<17x128xf32, #tpu.memory_space<vmem>>, %arg4: memref<4x128xf32, #tpu.memory_space<vmem>>) attributes {dimension_semantics = [#tpu.dimension_semantics<parallel>], iteration_bounds = array<i64: 1>, scalar_prefetch = 0 : i64, scratch_operands = 0 : i64, tpu.core_type = #tpu.core_type<tc>, window_params = [{transform_indices = @transform_0, window_bounds = array<i64: 4, 128>}, {pipeline_mode = #tpu.pipeline_mode<synchronous>, transform_indices = @transform_1, window_bounds = array<i64: 128, 16>}, {pipeline_mode = #tpu.pipeline_mode<synchronous>, transform_indices = @transform_2, window_bounds = array<i64: 17, 128>}, {transform_indices = @transform_3, window_bounds = array<i64: 4, 128>}]} {
    %c0 = arith.constant 0 : index
    %c0_0 = arith.constant 0 : index
    %0 = vector.load %arg1[%c0, %c0_0] : memref<4x128xf32, #tpu.memory_space<vmem>>, vector<4x128xf32>
    %c0_1 = arith.constant 0 : index
    %c0_2 = arith.constant 0 : index
    %1 = vector.load %arg2[%c0_1, %c0_2] : memref<128x16xf32, #tpu.memory_space<vmem>>, vector<128x16xf32>
    %c0_3 = arith.constant 0 : index
    %c0_4 = arith.constant 0 : index
    %2 = vector.load %arg3[%c0_3, %c0_4] : memref<17x128xf32, #tpu.memory_space<vmem>>, vector<17x128xf32>
    %cst = arith.constant dense<0.000000e+00> : vector<4x16xf32>
    %3 = tpu.matmul %0, %1, %cst {dimension_numbers = #tpu.dot_dimension_numbers<[1], [0], [0], [1], [0, 0, 1, 1], [], []>} : vector<4x128xf32>, vector<128x16xf32>, vector<4x16xf32> -> vector<4x16xf32>
    %4 = arith.mulf %0, %0 : vector<4x128xf32>
    %cst_5 = arith.constant dense<0.000000e+00> : vector<4x16xf32>
    %5 = tpu.matmul %4, %1, %cst_5 {dimension_numbers = #tpu.dot_dimension_numbers<[1], [0], [0], [1], [0, 0, 1, 1], [], []>} : vector<4x128xf32>, vector<128x16xf32>, vector<4x16xf32> -> vector<4x16xf32>
    %cst_6 = arith.constant 1.250000e-01 : f32
    %6 = vector.broadcast %cst_6 : f32 to vector<4x16xf32>
    %7 = arith.mulf %3, %6 : vector<4x16xf32>
    %cst_7 = arith.constant 1.250000e-01 : f32
    %8 = vector.broadcast %cst_7 : f32 to vector<4x16xf32>
    %9 = arith.mulf %5, %8 : vector<4x16xf32>
    %10 = arith.mulf %7, %7 : vector<4x16xf32>
    %11 = arith.subf %9, %10 : vector<4x16xf32>
    %cst_8 = arith.constant 0.000000e+00 : f32
    %12 = vector.broadcast %cst_8 : f32 to vector<4x16xf32>
    %13 = arith.maximumf %11, %12 : vector<4x16xf32>
    %cst_9 = arith.constant 9.99999974E-6 : f32
    %14 = vector.broadcast %cst_9 : f32 to vector<4x16xf32>
    %15 = arith.addf %13, %14 : vector<4x16xf32>
    %16 = math.rsqrt %15 : vector<4x16xf32>
    %cst_10 = arith.constant 0.000000e+00 : f32
    %17 = vector.broadcast %cst_10 : f32 to vector<4x1xf32>
    %cst_11 = arith.constant 1.000000e+00 : f32
    %18 = vector.broadcast %cst_11 : f32 to vector<4x1xf32>
    %19 = tpu.concatenate %16, %17 in 1 : vector<4x16xf32>, vector<4x1xf32> -> vector<4x17xf32>
    %cst_12 = arith.constant dense<0.000000e+00> : vector<4x128xf32>
    %20 = tpu.matmul %19, %2, %cst_12 {dimension_numbers = #tpu.dot_dimension_numbers<[1], [0], [0], [1], [0, 0, 1, 1], [], []>} : vector<4x17xf32>, vector<17x128xf32>, vector<4x128xf32> -> vector<4x128xf32>
    %21 = arith.mulf %7, %16 : vector<4x16xf32>
    %cst_13 = arith.constant 0.000000e+00 : f32
    %22 = vector.broadcast %cst_13 : f32 to vector<4x16xf32>
    %23 = arith.subf %22, %21 : vector<4x16xf32>
    %24 = tpu.concatenate %23, %18 in 1 : vector<4x16xf32>, vector<4x1xf32> -> vector<4x17xf32>
    %cst_14 = arith.constant dense<0.000000e+00> : vector<4x128xf32>
    %25 = tpu.matmul %24, %2, %cst_14 {dimension_numbers = #tpu.dot_dimension_numbers<[1], [0], [0], [1], [0, 0, 1, 1], [], []>} : vector<4x17xf32>, vector<17x128xf32>, vector<4x128xf32> -> vector<4x128xf32>
    %26 = arith.mulf %0, %20 : vector<4x128xf32>
    %27 = arith.addf %26, %25 : vector<4x128xf32>
    %c0_15 = arith.constant 0 : index
    %c0_16 = arith.constant 0 : index
    %28 = vector.load %arg4[%c0_15, %c0_16] : memref<4x128xf32, #tpu.memory_space<vmem>>, vector<4x128xf32>
    tpu.vector_store %arg4[%c0_15, %c0_16], %27 {strides = array<i32>} : memref<4x128xf32, #tpu.memory_space<vmem>>, vector<4x128xf32>,
    return
  }
  func.func @transform_0(%arg0: i32) -> (i32, i32) {
    %c0_i32 = arith.constant 0 : i32
    %c0_i32_0 = arith.constant 0 : i32
    return %arg0, %c0_i32 : i32, i32
  }
  func.func @transform_1(%arg0: i32) -> (i32, i32) {
    %c0_i32 = arith.constant 0 : i32
    %c0_i32_0 = arith.constant 0 : i32
    %c0_i32_1 = arith.constant 0 : i32
    return %c0_i32, %c0_i32_0 : i32, i32
  }
  func.func @transform_2(%arg0: i32) -> (i32, i32) {
    %c0_i32 = arith.constant 0 : i32
    %c0_i32_0 = arith.constant 0 : i32
    %c0_i32_1 = arith.constant 0 : i32
    return %c0_i32, %c0_i32_0 : i32, i32
  }
  func.func @transform_3(%arg0: i32) -> (i32, i32) {
    %c0_i32 = arith.constant 0 : i32
    %c0_i32_0 = arith.constant 0 : i32
    return %arg0, %c0_i32 : i32, i32
  }
}

</mosaic_0001>

<llo_original>
// kernel: tpu_custom_call.1
$region0: #{tpu_custom_call.1}
  #allocation0 [shape = 'u32[]', space=smem, size = 0x4, offset = 0x4, fixed_abs, tag = 'smem constant byte address 0x4 - core index']
  #allocation1 [shape = 'u32[144,128]{1,0:T(1,128)}', space=vmem, size = 0x12000, scoped, tag = 'internal scratch']
  %s0 = inlined_call_operand.vmem [shape: f32[4,128], index: 0, kind: input, shape index: {}]
  %s1 = inlined_call_operand.vmem [shape: f32[128,16], index: 1, kind: input, shape index: {}]
  %s2 = inlined_call_operand.vmem [shape: f32[17,128], index: 2, kind: input, shape index: {}]
  %s3 = inlined_call_operand.hbm [shape: f32[4,128], index: 3, kind: output, shape index: {}]
  %s4 = sld [smem:[#allocation0]]
  $region22: #{tpu_custom_call.1} parent=0
    _
  %s6 = ssub.s32 1, %s4
  %s7 = scalar_select 0, %s6, %s4
  $region1: #{tpu_custom_call.1} parent=0
    #allocation2 [shape = 'u8[2048]{0}', space=vmem, size = 0x800, scoped, tag = 'output window, operand 0, single buffered']
    #allocation3 [shape = 's32[1]{0}', space=sflag, size = 0x4, scoped, tag = 'scoped memory for tpu_custom_call.1']
    %8 = vsyncpa [#allocation3], 0
    // Predicated region
    $region2: #{tpu_custom_call.1} parent=1 // pred_check
      _
    $region3: #{tpu_custom_call.1} parent=1 // pred_check_branch
      %10 = sbr.rel (0) target = $region5
    $region4: #{tpu_custom_call.1} parent=1 // pred_region
      _
    $region5: #{tpu_custom_call.1} parent=1 // pred_fallthru
      _
    // Predicated region
    $region6: #{tpu_custom_call.1} parent=1 // pred_check
      _
    $region7: #{tpu_custom_call.1} parent=1 // pred_check_branch
      %12 = sbr.rel (0) target = $region9
    $region8: #{tpu_custom_call.1} parent=1 // pred_region
      _
    $region9: #{tpu_custom_call.1} parent=1 // pred_fallthru
      _
    // Predicated region
    $region10: #{tpu_custom_call.1} parent=1 // pred_check
      _
    $region11: #{tpu_custom_call.1} parent=1 // pred_check_branch
      %14 = sbr.rel (0) target = $region13
    $region12: #{tpu_custom_call.1} parent=1 // pred_region
      _
    $region13: #{tpu_custom_call.1} parent=1 // pred_fallthru
      _
    %v15 = vld [vmem:[%s0] sm:$0xf]
    %v16 = vld [vmem:[%s1] sm:$0xff]
    %v17 = vld [vmem:[%s1 + $0x8] sm:$0xff]
    %v18 = vld [vmem:[%s1 + $0x10] sm:$0xff]
    %v19 = vld [vmem:[%s1 + $0x18] sm:$0xff]
    %v20 = vld [vmem:[%s1 + $0x20] sm:$0xff]
    %v21 = vld [vmem:[%s1 + $0x28] sm:$0xff]
    %v22 = vld [vmem:[%s1 + $0x30] sm:$0xff]
    %v23 = vld [vmem:[%s1 + $0x38] sm:$0xff]
    %v24 = vld [vmem:[%s1 + $0x40] sm:$0xff]
    %v25 = vld [vmem:[%s1 + $0x48] sm:$0xff]
    %v26 = vld [vmem:[%s1 + $0x50] sm:$0xff]
    %v27 = vld [vmem:[%s1 + $0x58] sm:$0xff]
    %v28 = vld [vmem:[%s1 + $0x60] sm:$0xff]
    %v29 = vld [vmem:[%s1 + $0x68] sm:$0xff]
    %v30 = vld [vmem:[%s1 + $0x70] sm:$0xff]
    %v31 = vld [vmem:[%s1 + $0x78] sm:$0xff]
    %v32 = vld [vmem:[%s2] sm:$0xff]
    %v33 = vld [vmem:[%s2 + $0x8] sm:$0xff]
    %v34 = vld [vmem:[%s2 + $0x10] sm:$0x1]
    %35 = vmatprep.subr.mxu0 0.0
    %36 = vmatpush1.msra.mxu0 %v31
    %37 = vmatprep.subr.mxu0 0.0
    %38 = vmatpush1.msra.mxu0 %v30
    %39 = vmatprep.subr.mxu0 0.0
    %40 = vmatpush1.msra.mxu0 %v29
    %41 = vmatprep.subr.mxu0 0.0
    %42 = vmatpush1.msra.mxu0 %v28
    %43 = vmatprep.subr.mxu0 0.0
    %44 = vmatpush1.msra.mxu0 %v27
    %45 = vmatprep.subr.mxu0 0.0
    %46 = vmatpush1.msra.mxu0 %v26
    %47 = vmatprep.subr.mxu0 0.0
    %48 = vmatpush1.msra.mxu0 %v25
    %49 = vmatprep.subr.mxu0 0.0
    %50 = vmatpush1.msra.mxu0 %v24
    %51 = vmatprep.subr.mxu0 0.0
    %52 = vmatpush1.msra.mxu0 %v23
    %53 = vmatprep.subr.mxu0 0.0
    %54 = vmatpush1.msra.mxu0 %v22
    %55 = vmatprep.subr.mxu0 0.0
    %56 = vmatpush1.msra.mxu0 %v21
    %57 = vmatprep.subr.mxu0 0.0
    %58 = vmatpush1.msra.mxu0 %v20
    %59 = vmatprep.subr.mxu0 0.0
    %60 = vmatpush1.msra.mxu0 %v19
    %61 = vmatprep.subr.mxu0 0.0
    %62 = vmatpush1.msra.mxu0 %v18
    %63 = vmatprep.subr.mxu0 0.0
    %64 = vmatpush1.msra.mxu0 %v17
    %65 = vmatprep.subr.mxu0 0.0
    %66 = vmatpush1.msra.mxu0 %v16
    %67 = vmatprep.subr.mxu0 0.0
    %68 = vmatpush2.msra.mxu0 0.0
    %69 = vmatprep.subr.mxu0 0.0
    %70 = vmatpush2.msra.mxu0 0.0
    %71 = vmatprep.subr.mxu0 0.0
    %72 = vmatpush2.msra.mxu0 0.0
    %73 = vmatprep.subr.mxu0 0.0
    %74 = vmatpush2.msra.mxu0 0.0
    %75 = vmatprep.subr.mxu0 0.0
    %76 = vmatpush2.msra.mxu0 0.0
    %77 = vmatprep.subr.mxu0 0.0
    %78 = vmatpush2.msra.mxu0 0.0
    %79 = vmatprep.subr.mxu0 0.0
    %80 = vmatpush2.msra.mxu0 0.0
    %81 = vmatprep.subr.mxu0 0.0
    %82 = vmatpush2.msra.mxu0 0.0
    %83 = vmatprep.subr.mxu0 0.0
    %84 = vmatpush2.msra.mxu0 0.0
    %85 = vmatprep.subr.mxu0 0.0
    %86 = vmatpush2.msra.mxu0 0.0
    %87 = vmatprep.subr.mxu0 0.0
    %88 = vmatpush2.msra.mxu0 0.0
    %89 = vmatprep.subr.mxu0 0.0
    %90 = vmatpush2.msra.mxu0 0.0
    %91 = vmatprep.subr.mxu0 0.0
    %92 = vmatpush2.msra.mxu0 0.0
    %93 = vmatprep.subr.mxu0 0.0
    %94 = vmatpush2.msra.mxu0 0.0
    %95 = vmatprep.subr.mxu0 0.0
    %96 = vmatpush2.msra.mxu0 0.0
    %97 = vmatprep.subr.mxu0 0.0
    %98 = vmatpush2.msra.mxu0 0.0
    %99 = vmatprep.mubr.f32.mxu0 0.0
    %100 = vmatmul.mubr.f32.gmra.mxu0 %v15
    %v101 = vpop.f32.mrf.mxu0
    %v102 = vadd.f32 0.0, %v101
    %v103 = vpop.f32.mrf.mxu0
    %104 = vdwg.mxu0
    %v105 = vmul.f32 %v15, %v15
    %106 = vmatprep.subr.mxu0 0.0
    %107 = vmatpush1.msra.mxu0 %v31
    %108 = vmatprep.subr.mxu0 0.0
    %109 = vmatpush1.msra.mxu0 %v30
    %110 = vmatprep.subr.mxu0 0.0
    %111 = vmatpush1.msra.mxu0 %v29
    %112 = vmatprep.subr.mxu0 0.0
    %113 = vmatpush1.msra.mxu0 %v28
    %114 = vmatprep.subr.mxu0 0.0
    %115 = vmatpush1.msra.mxu0 %v27
    %116 = vmatprep.subr.mxu0 0.0
    %117 = vmatpush1.msra.mxu0 %v26
    %118 = vmatprep.subr.mxu0 0.0
    %119 = vmatpush1.msra.mxu0 %v25
    %120 = vmatprep.subr.mxu0 0.0
    %121 = vmatpush1.msra.mxu0 %v24
    %122 = vmatprep.subr.mxu0 0.0
    %123 = vmatpush1.msra.mxu0 %v23
    %124 = vmatprep.subr.mxu0 0.0
    %125 = vmatpush1.msra.mxu0 %v22
    %126 = vmatprep.subr.mxu0 0.0
    %127 = vmatpush1.msra.mxu0 %v21
    %128 = vmatprep.subr.mxu0 0.0
    %129 = vmatpush1.msra.mxu0 %v20
    %130 = vmatprep.subr.mxu0 0.0
    %131 = vmatpush1.msra.mxu0 %v19
    %132 = vmatprep.subr.mxu0 0.0
    %133 = vmatpush1.msra.mxu0 %v18
    %134 = vmatprep.subr.mxu0 0.0
    %135 = vmatpush1.msra.mxu0 %v17
    %136 = vmatprep.subr.mxu0 0.0
    %137 = vmatpush1.msra.mxu0 %v16
    %138 = vmatprep.subr.mxu0 0.0
    %139 = vmatpush2.msra.mxu0 0.0
    %140 = vmatprep.subr.mxu0 0.0
    %141 = vmatpush2.msra.mxu0 0.0
    %142 = vmatprep.subr.mxu0 0.0
    %143 = vmatpush2.msra.mxu0 0.0
    %144 = vmatprep.subr.mxu0 0.0
    %145 = vmatpush2.msra.mxu0 0.0
    %146 = vmatprep.subr.mxu0 0.0
    %147 = vmatpush2.msra.mxu0 0.0
    %148 = vmatprep.subr.mxu0 0.0
    %149 = vmatpush2.msra.mxu0 0.0
    %150 = vmatprep.subr.mxu0 0.0
    %151 = vmatpush2.msra.mxu0 0.0
    %152 = vmatprep.subr.mxu0 0.0
    %153 = vmatpush2.msra.mxu0 0.0
    %154 = vmatprep.subr.mxu0 0.0
    %155 = vmatpush2.msra.mxu0 0.0
    %156 = vmatprep.subr.mxu0 0.0
    %157 = vmatpush2.msra.mxu0 0.0
    %158 = vmatprep.subr.mxu0 0.0
    %159 = vmatpush2.msra.mxu0 0.0
    %160 = vmatprep.subr.mxu0 0.0
    %161 = vmatpush2.msra.mxu0 0.0
    %162 = vmatprep.subr.mxu0 0.0
    %163 = vmatpush2.msra.mxu0 0.0
    %164 = vmatprep.subr.mxu0 0.0
    %165 = vmatpush2.msra.mxu0 0.0
    %166 = vmatprep.subr.mxu0 0.0
    %167 = vmatpush2.msra.mxu0 0.0
    %168 = vmatprep.subr.mxu0 0.0
    %169 = vmatpush2.msra.mxu0 0.0
    %170 = vmatprep.mubr.f32.mxu0 0.0
    %171 = vmatmul.mubr.f32.gmra.mxu0 %v105
    %v172 = vpop.f32.mrf.mxu0
    %v173 = vadd.f32 0.0, %v172
    %v174 = vpop.f32.mrf.mxu0
    %175 = vdwg.mxu0
    %v176 = vmul.f32 %v102, 0.125
    %v177 = vmul.f32 %v173, 0.125
    %v178 = vmul.f32 %v176, %v176
    %v179 = vsub.f32 %v177, %v178
    %v180 = vmax.f32 %v179, 0.0
    %v181 = vadd.f32 %v180, 1e-05
    %v182 = vrsqrt.pop %v181
    %vm183 = vcmask 130048
    %v184 = vsel %vm183, %v182, 0.0
    %vm185 = vcmask 138240
    %v187 = vsel %vm185, %v184, 0
    %vm189 = vcmask 1040384
    %v191 = vsel %vm189, %v34, 0
    %193 = vmatprep.subr.mxu0 0.0
    %194 = vmatpush1.msra.mxu0 0.0
    %195 = vmatprep.subr.mxu0 0.0
    %196 = vmatpush1.msra.mxu0 0.0
    %197 = vmatprep.subr.mxu0 0.0
    %198 = vmatpush1.msra.mxu0 0.0
    %199 = vmatprep.subr.mxu0 0.0
    %200 = vmatpush1.msra.mxu0 0.0
    %201 = vmatprep.subr.mxu0 0.0
    %202 = vmatpush1.msra.mxu0 0.0
    %203 = vmatprep.subr.mxu0 0.0
    %204 = vmatpush1.msra.mxu0 0.0
    %205 = vmatprep.subr.mxu0 0.0
    %206 = vmatpush1.msra.mxu0 0.0
    %207 = vmatprep.subr.mxu0 0.0
    %208 = vmatpush1.msra.mxu0 0.0
    %209 = vmatprep.subr.mxu0 0.0
    %210 = vmatpush1.msra.mxu0 0.0
    %211 = vmatprep.subr.mxu0 0.0
    %212 = vmatpush1.msra.mxu0 0.0
    %213 = vmatprep.subr.mxu0 0.0
    %214 = vmatpush1.msra.mxu0 0.0
    %215 = vmatprep.subr.mxu0 0.0
    %216 = vmatpush1.msra.mxu0 0.0
    %217 = vmatprep.subr.mxu0 0.0
    %218 = vmatpush1.msra.mxu0 0.0
    %219 = vmatprep.subr.mxu0 0.0
    %220 = vmatpush1.msra.mxu0 %v191
    %221 = vmatprep.subr.mxu0 0.0
    %222 = vmatpush1.msra.mxu0 %v33
    %223 = vmatprep.subr.mxu0 0.0
    %224 = vmatpush1.msra.mxu0 %v32
    %225 = vmatprep.subr.mxu0 0.0
    %226 = vmatpush2.msra.mxu0 0.0
    %227 = vmatprep.subr.mxu0 0.0
    %228 = vmatpush2.msra.mxu0 0.0
    %229 = vmatprep.subr.mxu0 0.0
    %230 = vmatpush2.msra.mxu0 0.0
    %231 = vmatprep.subr.mxu0 0.0
    %232 = vmatpush2.msra.mxu0 0.0
    %233 = vmatprep.subr.mxu0 0.0
    %234 = vmatpush2.msra.mxu0 0.0
    %235 = vmatprep.subr.mxu0 0.0
    %236 = vmatpush2.msra.mxu0 0.0
    %237 = vmatprep.subr.mxu0 0.0
    %238 = vmatpush2.msra.mxu0 0.0
    %239 = vmatprep.subr.mxu0 0.0
    %240 = vmatpush2.msra.mxu0 0.0
    %241 = vmatprep.subr.mxu0 0.0
    %242 = vmatpush2.msra.mxu0 0.0
    %243 = vmatprep.subr.mxu0 0.0
    %244 = vmatpush2.msra.mxu0 0.0
    %245 = vmatprep.subr.mxu0 0.0
    %246 = vmatpush2.msra.mxu0 0.0
    %247 = vmatprep.subr.mxu0 0.0
    %248 = vmatpush2.msra.mxu0 0.0
    %249 = vmatprep.subr.mxu0 0.0
    %250 = vmatpush2.msra.mxu0 0.0
    %251 = vmatprep.subr.mxu0 0.0
    %252 = vmatpush2.msra.mxu0 0.0
    %253 = vmatprep.subr.mxu0 0.0
    %254 = vmatpush2.msra.mxu0 0.0
    %255 = vmatprep.subr.mxu0 0.0
    %256 = vmatpush2.msra.mxu0 0.0
    %257 = vmatprep.mubr.f32.mxu0 0.0
    %258 = vmatmul.mubr.f32.gmra.mxu0 %v187
    %v259 = vpop.f32.mrf.mxu0
    %v260 = vadd.f32 0.0, %v259
    %v261 = vpop.f32.mrf.mxu0
    %262 = vdwg.mxu0
    %v263 = vmul.f32 %v176, %v182
    %v264 = vsub.f32 0.0, %v263
    %v265 = vsel %vm183, %v264, 1.0
    %v267 = vsel %vm185, %v265, 0
    %269 = vmatprep.subr.mxu0 0.0
    %270 = vmatpush1.msra.mxu0 0.0
    %271 = vmatprep.subr.mxu0 0.0
    %272 = vmatpush1.msra.mxu0 0.0
    %273 = vmatprep.subr.mxu0 0.0
    %274 = vmatpush1.msra.mxu0 0.0
    %275 = vmatprep.subr.mxu0 0.0
    %276 = vmatpush1.msra.mxu0 0.0
    %277 = vmatprep.subr.mxu0 0.0
    %278 = vmatpush1.msra.mxu0 0.0
    %279 = vmatprep.subr.mxu0 0.0
    %280 = vmatpush1.msra.mxu0 0.0
    %281 = vmatprep.subr.mxu0 0.0
    %282 = vmatpush1.msra.mxu0 0.0
    %283 = vmatprep.subr.mxu0 0.0
    %284 = vmatpush1.msra.mxu0 0.0
    %285 = vmatprep.subr.mxu0 0.0
    %286 = vmatpush1.msra.mxu0 0.0
    %287 = vmatprep.subr.mxu0 0.0
    %288 = vmatpush1.msra.mxu0 0.0
    %289 = vmatprep.subr.mxu0 0.0
    %290 = vmatpush1.msra.mxu0 0.0
    %291 = vmatprep.subr.mxu0 0.0
    %292 = vmatpush1.msra.mxu0 0.0
    %293 = vmatprep.subr.mxu0 0.0
    %294 = vmatpush1.msra.mxu0 0.0
    %295 = vmatprep.subr.mxu0 0.0
    %296 = vmatpush1.msra.mxu0 %v191
    %297 = vmatprep.subr.mxu0 0.0
    %298 = vmatpush1.msra.mxu0 %v33
    %299 = vmatprep.subr.mxu0 0.0
    %300 = vmatpush1.msra.mxu0 %v32
    %301 = vmatprep.subr.mxu0 0.0
    %302 = vmatpush2.msra.mxu0 0.0
    %303 = vmatprep.subr.mxu0 0.0
    %304 = vmatpush2.msra.mxu0 0.0
    %305 = vmatprep.subr.mxu0 0.0
    %306 = vmatpush2.msra.mxu0 0.0
    %307 = vmatprep.subr.mxu0 0.0
    %308 = vmatpush2.msra.mxu0 0.0
    %309 = vmatprep.subr.mxu0 0.0
    %310 = vmatpush2.msra.mxu0 0.0
    %311 = vmatprep.subr.mxu0 0.0
    %312 = vmatpush2.msra.mxu0 0.0
    %313 = vmatprep.subr.mxu0 0.0
    %314 = vmatpush2.msra.mxu0 0.0
    %315 = vmatprep.subr.mxu0 0.0
    %316 = vmatpush2.msra.mxu0 0.0
    %317 = vmatprep.subr.mxu0 0.0
    %318 = vmatpush2.msra.mxu0 0.0
    %319 = vmatprep.subr.mxu0 0.0
    %320 = vmatpush2.msra.mxu0 0.0
    %321 = vmatprep.subr.mxu0 0.0
    %322 = vmatpush2.msra.mxu0 0.0
    %323 = vmatprep.subr.mxu0 0.0
    %324 = vmatpush2.msra.mxu0 0.0
    %325 = vmatprep.subr.mxu0 0.0
    %326 = vmatpush2.msra.mxu0 0.0
    %327 = vmatprep.subr.mxu0 0.0
    %328 = vmatpush2.msra.mxu0 0.0
    %329 = vmatprep.subr.mxu0 0.0
    %330 = vmatpush2.msra.mxu0 0.0
    %331 = vmatprep.subr.mxu0 0.0
    %332 = vmatpush2.msra.mxu0 0.0
    %333 = vmatprep.mubr.f32.mxu0 0.0
    %334 = vmatmul.mubr.f32.gmra.mxu0 %v267
    %v335 = vpop.f32.mrf.mxu0
    %v336 = vadd.f32 0.0, %v335
    %v337 = vpop.f32.mrf.mxu0
    %338 = vdwg.mxu0
    %v339 = vmul.f32 %v15, %v260
    %v340 = vadd.f32 %v339, %v336
    %341 = vst [vmem:[#allocation2] sm:$0xf] %v340
    // Predicated region
    $region14: #{tpu_custom_call.1} parent=1 // pred_check
      _
    $region15: #{tpu_custom_call.1} parent=1 // pred_check_branch
      %343 = sbr.rel (0) target = $region17
    $region16: #{tpu_custom_call.1} parent=1 // pred_region
      %s345 = ssub.s32 64, 64
      %346 = vsyncadd [#allocation3], %s345
      %s348 = sshll.u32 [#allocation2], 4
      %s349 = int_to_ptr.vmem [resolvable:$true] %s348
      %351 = dma.vmem_to_hbm [thread:$0]  %s349, 64, %s3, [#allocation3]
    $region17: #{tpu_custom_call.1} parent=1 // pred_fallthru
      _
    // Predicated region
    $region18: #{tpu_custom_call.1} parent=1 // pred_check
      _
    $region19: #{tpu_custom_call.1} parent=1 // pred_check_branch
      %353 = sbr.rel (0) target = $region21
    $region20: #{tpu_custom_call.1} parent=1 // pred_region
      %354 = dma.done [#allocation3], 64
    $region21: #{tpu_custom_call.1} parent=1 // pred_fallthru
      _
    %355 = vsyncpa [#allocation3], 1

</llo_original>
